<compile_context>
chip_gen: v7x
topology: tpu7x:2x2x1
jax: 0.10.0
libtpu: 0.0.40
codegen_flags: <defaults>
</compile_context>

<pallas_src>
import numpy as np
import jax
import jax.numpy as jnp
from jax.experimental import pallas as pl
from jax.experimental.pallas import tpu as pltpu


def _silu_f32(z):
    # silu(z) = z * sigmoid(z) = 0.5 * z * (1 + tanh(0.5 * z))  -- one EUP op.
    return 0.5 * z * (1.0 + jnp.tanh(0.5 * z))


def so3_mlp_kernel(xt_ref,
                   w1_ref, b1_ref, w2_ref, b2_ref,
                   w3_ref, b3_ref, w4_ref, b4_ref,
                   out_ref):
    # xt_ref: (din, tm) f32 -- batch on the lane axis (dense 128-lane vregs).
    xt_f32 = xt_ref[...]
    xt = xt_f32.astype(jnp.bfloat16)                 # bf16 operand for the MXU

    # --- MLP hot path: bf16 MXU matmuls, f32 accumulation, f32 elementwise ---
    # Weights are pre-transposed: w_ref is (fan_out, fan_in); biases (fan_out,1)
    # broadcast across the lane (batch) axis.
    h = _silu_f32(jnp.dot(w1_ref[...], xt,
                          preferred_element_type=jnp.float32) + b1_ref[...])
    h = _silu_f32(jnp.dot(w2_ref[...], h.astype(jnp.bfloat16),
                          preferred_element_type=jnp.float32) + b2_ref[...])
    h = _silu_f32(jnp.dot(w3_ref[...], h.astype(jnp.bfloat16),
                          preferred_element_type=jnp.float32) + b3_ref[...])
    v = jnp.dot(w4_ref[...], h.astype(jnp.bfloat16),
                preferred_element_type=jnp.float32) + b4_ref[...]    # (4, tm)

    din = xt_f32.shape[0]
    tm = xt_f32.shape[1]

    # sublane-row index: rows 0..2 -> k, row 3 -> theta
    row = jax.lax.broadcasted_iota(jnp.int32, (4, tm), 0)

    # p = input[:, -4:-1] -> rows din-4..din-2 of x^T; row din-1 (time) zeroed.
    p4 = jnp.where(row < 3, xt_f32[din - 4:din, :], 0.0)             # (4, tm)

    # --- sp_proj(p, v[:3]): unrolled 3-wide dot products (VPU only) ---
    pv = (p4[0:1, :] * v[0:1, :]
          + p4[1:2, :] * v[1:2, :]
          + p4[2:3, :] * v[2:3, :])                                  # (1, tm)
    pp = (p4[0:1, :] * p4[0:1, :]
          + p4[1:2, :] * p4[1:2, :]
          + p4[2:3, :] * p4[2:3, :])                                 # (1, tm)
    inv_pp = pl.reciprocal(pp + jnp.float32(1e-12), approx=True)

    # rows 0..2: k = v - (<p,v>/<p,p>) * p ; row 3 is untouched (p4 row 3 == 0)
    proj = v - (pv * inv_pp) * p4                                    # (4, tm)

    # theta = fmod(v + pi, 2*pi) - pi (only row 3 is selected below)
    pi = jnp.float32(np.pi)
    theta = jnp.fmod(v + pi, 2.0 * pi) - pi                          # (4, tm)

    # single lane-dense full-block store
    out_ref[...] = jnp.where(row < 3, proj, theta).astype(out_ref.dtype)


def _num_tensorcores():
    # Best-effort detection: only v7x-class chips have 2 TensorCores/chip.
    try:
        kind = jax.devices()[0].device_kind.lower()
        if "v7" in kind:
            return 2
    except Exception:
        pass
    return 1


def _pick_tm(N, num_tc, cap=4096):
    """Largest valid batch tile: a divisor of N that is either N itself or a
    multiple of 128 (lane alignment).  Split into >=num_tc steps only when
    there are multiple TensorCores (grid is a serial loop otherwise)."""
    cands = [N]
    t = 128
    while t <= min(N, cap):
        if N % t == 0:
            cands.append(t)
        t += 128
    cands = sorted(set(cands))
    if num_tc >= 2:
        split = [t for t in cands if t <= cap and N // t >= num_tc]
        if split:
            return max(split)
    within = [t for t in cands if t <= cap]
    return max(within) if within else N


def so3_mlp(x, params, *, tm=None):
    """x: (N, in_dim + 1) float32 (time already appended as last column).
    Returns (k: (N, 3), theta: (N, 1))."""
    N, din = x.shape
    num_tc = _num_tensorcores()
    if tm is None:
        tm = _pick_tm(N, num_tc)
    assert N % tm == 0, "batch tile must divide the batch"
    assert tm == N or tm % 128 == 0, "interior tiles must be lane-aligned (x128)"

    (w1, b1, w2, b2, w3, b3, w4, b4) = params
    # Pre-transpose for the batch-in-lanes layout (done once in XLA, cheap):
    #   weights -> (fan_out, fan_in) bf16, biases -> (fan_out, 1) f32.
    wts = tuple(w.T.astype(jnp.bfloat16) for w in (w1, w2, w3, w4))
    bcs = tuple(b.reshape(-1, 1).astype(jnp.float32) for b in (b1, b2, b3, b4))
    xt = x.T                                          # (din, N)

    def full(arr):
        # whole-array block, same block index every grid step (stays resident)
        return pl.BlockSpec(arr.shape, lambda i: (0,) * arr.ndim)

    out = pl.pallas_call(
        so3_mlp_kernel,
        out_shape=jax.ShapeDtypeStruct((4, N), jnp.float32),
        grid_spec=pltpu.PrefetchScalarGridSpec(
            num_scalar_prefetch=0,
            grid=(N // tm,),
            in_specs=[
                pl.BlockSpec((din, tm), lambda i: (0, i)),
                full(wts[0]), full(bcs[0]),
                full(wts[1]), full(bcs[1]),
                full(wts[2]), full(bcs[2]),
                full(wts[3]), full(bcs[3]),
            ],
            out_specs=pl.BlockSpec((4, tm), lambda i: (0, i)),
        ),
        compiler_params=pltpu.CompilerParams(
            dimension_semantics=("parallel",)),
    )(xt, wts[0], bcs[0], wts[1], bcs[1], wts[2], bcs[2], wts[3], bcs[3])

    # undo the transpose outside the kernel (cheap XLA op)
    k = out[0:3, :].T
    theta = out[3:4, :].T
    return k, theta


def init_params(key, in_dim, hidden_dim, out_dim, time_varying=True):
    d0 = in_dim + (1 if time_varying else 0)
    dims = [(d0, hidden_dim), (hidden_dim, hidden_dim),
            (hidden_dim, hidden_dim), (hidden_dim, out_dim)]
    params = []
    for fan_in, fan_out in dims:
        kw, kb, key = jax.random.split(key, 3)
        bound = 1.0 / np.sqrt(fan_in)
        w = jax.random.uniform(kw, (fan_in, fan_out), jnp.float32,
                               minval=-bound, maxval=bound)
        b = jax.random.uniform(kb, (1, fan_out), jnp.float32,
                               minval=-bound, maxval=bound)
        params.extend([w, b])
    return tuple(params)


def so3_mlp_reference(x, params):
    """Pure-JAX reference mirroring the kernel's bf16 matmul casting."""
    (w1, b1, w2, b2, w3, b3, w4, b4) = params
    w1b, w2b, w3b, w4b = (w.astype(jnp.bfloat16) for w in (w1, w2, w3, w4))

    def silu(z):
        return z * jax.nn.sigmoid(z)

    h = silu(jnp.dot(x.astype(jnp.bfloat16), w1b,
                     preferred_element_type=jnp.float32) + b1)
    h = silu(jnp.dot(h.astype(jnp.bfloat16), w2b,
                     preferred_element_type=jnp.float32) + b2)
    h = silu(jnp.dot(h.astype(jnp.bfloat16), w3b,
                     preferred_element_type=jnp.float32) + b3)
    v = jnp.dot(h.astype(jnp.bfloat16), w4b,
                preferred_element_type=jnp.float32) + b4

    p = x[:, -4:-1]
    vv = v[:, :3]
    pv = jnp.sum(p * vv, axis=-1, keepdims=True)
    pp = jnp.sum(p * p, axis=-1, keepdims=True)
    k = vv - (pv / pp) * p
    theta = jnp.fmod(v[:, 3:4] + np.pi, 2.0 * np.pi) - np.pi
    return k, theta


if __name__ == "__main__":
    key = jax.random.PRNGKey(0)
    in_dim, hidden_dim, out_dim = 4, 64, 4
    N = 256  # batch

    kx, kp = jax.random.split(key)
    # input = [features (in_dim columns, last 3 of them are the sphere point p),
    #          time (1 column)]  -> shape (N, in_dim + 1)
    x = jax.random.normal(kx, (N, in_dim + 1), jnp.float32)

    params = init_params(kp, in_dim, hidden_dim, out_dim, time_varying=True)

    k, theta = so3_mlp(x, params)
    jax.block_until_ready((k, theta))

    assert k.shape == (N, 3) and theta.shape == (N, 1)
    assert bool(jnp.all(jnp.isfinite(k))) and bool(jnp.all(jnp.isfinite(theta)))

    k_ref, theta_ref = so3_mlp_reference(x, params)
    np.testing.assert_allclose(np.asarray(k), np.asarray(k_ref),
                               rtol=3e-2, atol=3e-2)
    np.testing.assert_allclose(np.asarray(theta), np.asarray(theta_ref),
                               rtol=3e-2, atol=3e-2)

    print("KERNEL_OK")
</pallas_src>

<mosaic_0001>
module attributes {stable_mosaic.version = 11 : i64} {
  func.func @so3_mlp_kernel(%arg0: i32, %arg1: memref<5x256xf32, #tpu.memory_space<vmem>>, %arg2: memref<64x5xbf16, #tpu.memory_space<vmem>>, %arg3: memref<64x1xf32, #tpu.memory_space<vmem>>, %arg4: memref<64x64xbf16, #tpu.memory_space<vmem>>, %arg5: memref<64x1xf32, #tpu.memory_space<vmem>>, %arg6: memref<64x64xbf16, #tpu.memory_space<vmem>>, %arg7: memref<64x1xf32, #tpu.memory_space<vmem>>, %arg8: memref<4x64xbf16, #tpu.memory_space<vmem>>, %arg9: memref<4x1xf32, #tpu.memory_space<vmem>>, %arg10: memref<4x256xf32, #tpu.memory_space<vmem>>) attributes {dimension_semantics = [#tpu.dimension_semantics<parallel>], iteration_bounds = array<i64: 1>, scalar_prefetch = 0 : i64, scratch_operands = 0 : i64, tpu.core_type = #tpu.core_type<tc>, window_params = [{transform_indices = @transform_0, window_bounds = array<i64: 5, 256>}, {pipeline_mode = #tpu.pipeline_mode<synchronous>, transform_indices = @transform_1, window_bounds = array<i64: 64, 5>}, {pipeline_mode = #tpu.pipeline_mode<synchronous>, transform_indices = @transform_2, window_bounds = array<i64: 64, 1>}, {pipeline_mode = #tpu.pipeline_mode<synchronous>, transform_indices = @transform_3, window_bounds = array<i64: 64, 64>}, {pipeline_mode = #tpu.pipeline_mode<synchronous>, transform_indices = @transform_4, window_bounds = array<i64: 64, 1>}, {pipeline_mode = #tpu.pipeline_mode<synchronous>, transform_indices = @transform_5, window_bounds = array<i64: 64, 64>}, {pipeline_mode = #tpu.pipeline_mode<synchronous>, transform_indices = @transform_6, window_bounds = array<i64: 64, 1>}, {pipeline_mode = #tpu.pipeline_mode<synchronous>, transform_indices = @transform_7, window_bounds = array<i64: 4, 64>}, {pipeline_mode = #tpu.pipeline_mode<synchronous>, transform_indices = @transform_8, window_bounds = array<i64: 4, 1>}, {transform_indices = @transform_9, window_bounds = array<i64: 4, 256>}]} {
    %c0 = arith.constant 0 : index
    %c0_0 = arith.constant 0 : index
    %0 = vector.load %arg1[%c0, %c0_0] : memref<5x256xf32, #tpu.memory_space<vmem>>, vector<5x256xf32>
    %1 = arith.truncf %0 : vector<5x256xf32> to vector<5x256xbf16>
    %c0_1 = arith.constant 0 : index
    %c0_2 = arith.constant 0 : index
    %2 = vector.load %arg2[%c0_1, %c0_2] : memref<64x5xbf16, #tpu.memory_space<vmem>>, vector<64x5xbf16>
    %cst = arith.constant dense<0.000000e+00> : vector<64x256xf32>
    %3 = tpu.matmul %2, %1, %cst {dimension_numbers = #tpu.dot_dimension_numbers<[1], [0], [0], [1], [0, 0, 1, 1], [], []>} : vector<64x5xbf16>, vector<5x256xbf16>, vector<64x256xf32> -> vector<64x256xf32>
    %c0_3 = arith.constant 0 : index
    %c0_4 = arith.constant 0 : index
    %4 = vector.load %arg3[%c0_3, %c0_4] : memref<64x1xf32, #tpu.memory_space<vmem>>, vector<64x1xf32>
    %5 = vector.broadcast %4 : vector<64x1xf32> to vector<64x256xf32>
    %6 = arith.addf %3, %5 : vector<64x256xf32>
    %cst_5 = arith.constant 5.000000e-01 : f32
    %7 = vector.broadcast %cst_5 : f32 to vector<64x256xf32>
    %8 = arith.mulf %7, %6 : vector<64x256xf32>
    %cst_6 = arith.constant 5.000000e-01 : f32
    %9 = vector.broadcast %cst_6 : f32 to vector<64x256xf32>
    %10 = arith.mulf %9, %6 : vector<64x256xf32>
    %11 = math.tanh %10 : vector<64x256xf32>
    %cst_7 = arith.constant 1.000000e+00 : f32
    %12 = vector.broadcast %cst_7 : f32 to vector<64x256xf32>
    %13 = arith.addf %12, %11 : vector<64x256xf32>
    %14 = arith.mulf %8, %13 : vector<64x256xf32>
    %c0_8 = arith.constant 0 : index
    %c0_9 = arith.constant 0 : index
    %15 = vector.load %arg4[%c0_8, %c0_9] : memref<64x64xbf16, #tpu.memory_space<vmem>>, vector<64x64xbf16>
    %16 = arith.truncf %14 : vector<64x256xf32> to vector<64x256xbf16>
    %cst_10 = arith.constant dense<0.000000e+00> : vector<64x256xf32>
    %17 = tpu.matmul %15, %16, %cst_10 {dimension_numbers = #tpu.dot_dimension_numbers<[1], [0], [0], [1], [0, 0, 1, 1], [], []>} : vector<64x64xbf16>, vector<64x256xbf16>, vector<64x256xf32> -> vector<64x256xf32>
    %c0_11 = arith.constant 0 : index
    %c0_12 = arith.constant 0 : index
    %18 = vector.load %arg5[%c0_11, %c0_12] : memref<64x1xf32, #tpu.memory_space<vmem>>, vector<64x1xf32>
    %19 = vector.broadcast %18 : vector<64x1xf32> to vector<64x256xf32>
    %20 = arith.addf %17, %19 : vector<64x256xf32>
    %cst_13 = arith.constant 5.000000e-01 : f32
    %21 = vector.broadcast %cst_13 : f32 to vector<64x256xf32>
    %22 = arith.mulf %21, %20 : vector<64x256xf32>
    %cst_14 = arith.constant 5.000000e-01 : f32
    %23 = vector.broadcast %cst_14 : f32 to vector<64x256xf32>
    %24 = arith.mulf %23, %20 : vector<64x256xf32>
    %25 = math.tanh %24 : vector<64x256xf32>
    %cst_15 = arith.constant 1.000000e+00 : f32
    %26 = vector.broadcast %cst_15 : f32 to vector<64x256xf32>
    %27 = arith.addf %26, %25 : vector<64x256xf32>
    %28 = arith.mulf %22, %27 : vector<64x256xf32>
    %c0_16 = arith.constant 0 : index
    %c0_17 = arith.constant 0 : index
    %29 = vector.load %arg6[%c0_16, %c0_17] : memref<64x64xbf16, #tpu.memory_space<vmem>>, vector<64x64xbf16>
    %30 = arith.truncf %28 : vector<64x256xf32> to vector<64x256xbf16>
    %cst_18 = arith.constant dense<0.000000e+00> : vector<64x256xf32>
    %31 = tpu.matmul %29, %30, %cst_18 {dimension_numbers = #tpu.dot_dimension_numbers<[1], [0], [0], [1], [0, 0, 1, 1], [], []>} : vector<64x64xbf16>, vector<64x256xbf16>, vector<64x256xf32> -> vector<64x256xf32>
    %c0_19 = arith.constant 0 : index
    %c0_20 = arith.constant 0 : index
    %32 = vector.load %arg7[%c0_19, %c0_20] : memref<64x1xf32, #tpu.memory_space<vmem>>, vector<64x1xf32>
    %33 = vector.broadcast %32 : vector<64x1xf32> to vector<64x256xf32>
    %34 = arith.addf %31, %33 : vector<64x256xf32>
    %cst_21 = arith.constant 5.000000e-01 : f32
    %35 = vector.broadcast %cst_21 : f32 to vector<64x256xf32>
    %36 = arith.mulf %35, %34 : vector<64x256xf32>
    %cst_22 = arith.constant 5.000000e-01 : f32
    %37 = vector.broadcast %cst_22 : f32 to vector<64x256xf32>
    %38 = arith.mulf %37, %34 : vector<64x256xf32>
    %39 = math.tanh %38 : vector<64x256xf32>
    %cst_23 = arith.constant 1.000000e+00 : f32
    %40 = vector.broadcast %cst_23 : f32 to vector<64x256xf32>
    %41 = arith.addf %40, %39 : vector<64x256xf32>
    %42 = arith.mulf %36, %41 : vector<64x256xf32>
    %c0_24 = arith.constant 0 : index
    %c0_25 = arith.constant 0 : index
    %43 = vector.load %arg8[%c0_24, %c0_25] : memref<4x64xbf16, #tpu.memory_space<vmem>>, vector<4x64xbf16>
    %44 = arith.truncf %42 : vector<64x256xf32> to vector<64x256xbf16>
    %cst_26 = arith.constant dense<0.000000e+00> : vector<4x256xf32>
    %45 = tpu.matmul %43, %44, %cst_26 {dimension_numbers = #tpu.dot_dimension_numbers<[1], [0], [0], [1], [0, 0, 1, 1], [], []>} : vector<4x64xbf16>, vector<64x256xbf16>, vector<4x256xf32> -> vector<4x256xf32>
    %c0_27 = arith.constant 0 : index
    %c0_28 = arith.constant 0 : index
    %46 = vector.load %arg9[%c0_27, %c0_28] : memref<4x1xf32, #tpu.memory_space<vmem>>, vector<4x1xf32>
    %47 = vector.broadcast %46 : vector<4x1xf32> to vector<4x256xf32>
    %48 = arith.addf %45, %47 : vector<4x256xf32>
    %49 = tpu.iota {dimensions = array<i32: 0>} : vector<4x256xi32>
    %c3_i32 = arith.constant 3 : i32
    %50 = vector.broadcast %c3_i32 : i32 to vector<4x256xi32>
    %51 = arith.cmpi slt, %49, %50 : vector<4x256xi32>
    %52 = vector.extract_strided_slice %0 {offsets = [1, 0], sizes = [4, 256], strides = [1, 1]} : vector<5x256xf32> to vector<4x256xf32>
    %cst_29 = arith.constant 0.000000e+00 : f32
    %53 = vector.broadcast %cst_29 : f32 to vector<4x256xf32>
    %54 = arith.select %51, %52, %53 : vector<4x256xi1>, vector<4x256xf32>
    %55 = vector.extract_strided_slice %54 {offsets = [0, 0], sizes = [1, 256], strides = [1, 1]} : vector<4x256xf32> to vector<1x256xf32>
    %56 = vector.extract_strided_slice %48 {offsets = [0, 0], sizes = [1, 256], strides = [1, 1]} : vector<4x256xf32> to vector<1x256xf32>
    %57 = arith.mulf %55, %56 : vector<1x256xf32>
    %58 = vector.extract_strided_slice %54 {offsets = [1, 0], sizes = [1, 256], strides = [1, 1]} : vector<4x256xf32> to vector<1x256xf32>
    %59 = vector.extract_strided_slice %48 {offsets = [1, 0], sizes = [1, 256], strides = [1, 1]} : vector<4x256xf32> to vector<1x256xf32>
    %60 = arith.mulf %58, %59 : vector<1x256xf32>
    %61 = arith.addf %57, %60 : vector<1x256xf32>
    %62 = vector.extract_strided_slice %54 {offsets = [2, 0], sizes = [1, 256], strides = [1, 1]} : vector<4x256xf32> to vector<1x256xf32>
    %63 = vector.extract_strided_slice %48 {offsets = [2, 0], sizes = [1, 256], strides = [1, 1]} : vector<4x256xf32> to vector<1x256xf32>
    %64 = arith.mulf %62, %63 : vector<1x256xf32>
    %65 = arith.addf %61, %64 : vector<1x256xf32>
    %66 = vector.extract_strided_slice %54 {offsets = [0, 0], sizes = [1, 256], strides = [1, 1]} : vector<4x256xf32> to vector<1x256xf32>
    %67 = vector.extract_strided_slice %54 {offsets = [0, 0], sizes = [1, 256], strides = [1, 1]} : vector<4x256xf32> to vector<1x256xf32>
    %68 = arith.mulf %66, %67 : vector<1x256xf32>
    %69 = vector.extract_strided_slice %54 {offsets = [1, 0], sizes = [1, 256], strides = [1, 1]} : vector<4x256xf32> to vector<1x256xf32>
    %70 = vector.extract_strided_slice %54 {offsets = [1, 0], sizes = [1, 256], strides = [1, 1]} : vector<4x256xf32> to vector<1x256xf32>
    %71 = arith.mulf %69, %70 : vector<1x256xf32>
    %72 = arith.addf %68, %71 : vector<1x256xf32>
    %73 = vector.extract_strided_slice %54 {offsets = [2, 0], sizes = [1, 256], strides = [1, 1]} : vector<4x256xf32> to vector<1x256xf32>
    %74 = vector.extract_strided_slice %54 {offsets = [2, 0], sizes = [1, 256], strides = [1, 1]} : vector<4x256xf32> to vector<1x256xf32>
    %75 = arith.mulf %73, %74 : vector<1x256xf32>
    %76 = arith.addf %72, %75 : vector<1x256xf32>
    %cst_30 = arith.constant 9.99999996E-13 : f32
    %77 = vector.broadcast %cst_30 : f32 to vector<1x256xf32>
    %78 = arith.addf %76, %77 : vector<1x256xf32>
    %79 = tpu.reciprocal %78 {approx = true} : vector<1x256xf32> -> vector<1x256xf32>
    %80 = arith.mulf %65, %79 : vector<1x256xf32>
    %81 = vector.broadcast %80 : vector<1x256xf32> to vector<4x256xf32>
    %82 = arith.mulf %81, %54 : vector<4x256xf32>
    %83 = arith.subf %48, %82 : vector<4x256xf32>
    %cst_31 = arith.constant 3.14159274 : f32
    %84 = vector.broadcast %cst_31 : f32 to vector<4x256xf32>
    %85 = arith.addf %48, %84 : vector<4x256xf32>
    %cst_32 = arith.constant 2.000000e+00 : f32
    %cst_33 = arith.constant 3.14159274 : f32
    %86 = arith.mulf %cst_32, %cst_33 : f32
    %87 = vector.broadcast %86 : f32 to vector<4x256xf32>
    %88 = arith.remf %85, %87 : vector<4x256xf32>
    %cst_34 = arith.constant 3.14159274 : f32
    %89 = vector.broadcast %cst_34 : f32 to vector<4x256xf32>
    %90 = arith.subf %88, %89 : vector<4x256xf32>
    %c3_i32_35 = arith.constant 3 : i32
    %91 = vector.broadcast %c3_i32_35 : i32 to vector<4x256xi32>
    %92 = arith.cmpi slt, %49, %91 : vector<4x256xi32>
    %93 = arith.select %92, %83, %90 : vector<4x256xi1>, vector<4x256xf32>
    %c0_36 = arith.constant 0 : index
    %c0_37 = arith.constant 0 : index
    %94 = vector.load %arg10[%c0_36, %c0_37] : memref<4x256xf32, #tpu.memory_space<vmem>>, vector<4x256xf32>
    tpu.vector_store %arg10[%c0_36, %c0_37], %93 {strides = array<i32>} : memref<4x256xf32, #tpu.memory_space<vmem>>, vector<4x256xf32>,
    return
  }
  func.func @transform_0(%arg0: i32) -> (i32, i32) {
    %c0_i32 = arith.constant 0 : i32
    %c0_i32_0 = arith.constant 0 : i32
    return %c0_i32, %arg0 : i32, i32
  }
  func.func @transform_1(%arg0: i32) -> (i32, i32) {
    %c0_i32 = arith.constant 0 : i32
    %c0_i32_0 = arith.constant 0 : i32
    %c0_i32_1 = arith.constant 0 : i32
    return %c0_i32, %c0_i32_0 : i32, i32
  }
  func.func @transform_2(%arg0: i32) -> (i32, i32) {
    %c0_i32 = arith.constant 0 : i32
    %c0_i32_0 = arith.constant 0 : i32
    %c0_i32_1 = arith.constant 0 : i32
    return %c0_i32, %c0_i32_0 : i32, i32
  }
  func.func @transform_3(%arg0: i32) -> (i32, i32) {
    %c0_i32 = arith.constant 0 : i32
    %c0_i32_0 = arith.constant 0 : i32
    %c0_i32_1 = arith.constant 0 : i32
    return %c0_i32, %c0_i32_0 : i32, i32
  }
  func.func @transform_4(%arg0: i32) -> (i32, i32) {
    %c0_i32 = arith.constant 0 : i32
    %c0_i32_0 = arith.constant 0 : i32
    %c0_i32_1 = arith.constant 0 : i32
    return %c0_i32, %c0_i32_0 : i32, i32
  }
  func.func @transform_5(%arg0: i32) -> (i32, i32) {
    %c0_i32 = arith.constant 0 : i32
    %c0_i32_0 = arith.constant 0 : i32
    %c0_i32_1 = arith.constant 0 : i32
    return %c0_i32, %c0_i32_0 : i32, i32
  }
  func.func @transform_6(%arg0: i32) -> (i32, i32) {
    %c0_i32 = arith.constant 0 : i32
    %c0_i32_0 = arith.constant 0 : i32
    %c0_i32_1 = arith.constant 0 : i32
    return %c0_i32, %c0_i32_0 : i32, i32
  }
  func.func @transform_7(%arg0: i32) -> (i32, i32) {
    %c0_i32 = arith.constant 0 : i32
    %c0_i32_0 = arith.constant 0 : i32
    %c0_i32_1 = arith.constant 0 : i32
    return %c0_i32, %c0_i32_0 : i32, i32
  }
  func.func @transform_8(%arg0: i32) -> (i32, i32) {
    %c0_i32 = arith.constant 0 : i32
    %c0_i32_0 = arith.constant 0 : i32
    %c0_i32_1 = arith.constant 0 : i32
    return %c0_i32, %c0_i32_0 : i32, i32
  }
  func.func @transform_9(%arg0: i32) -> (i32, i32) {
    %c0_i32 = arith.constant 0 : i32
    %c0_i32_0 = arith.constant 0 : i32
    return %c0_i32, %arg0 : i32, i32
  }
}

</mosaic_0001>

<llo_original>
// kernel: tpu_custom_call.1
$region0: #{tpu_custom_call.1}
  #allocation0 [shape = 'u32[]', space=smem, size = 0x4, offset = 0x4, fixed_abs, tag = 'smem constant byte address 0x4 - core index']
  #allocation1 [shape = 'u32[144,128]{1,0:T(1,128)}', space=vmem, size = 0x12000, scoped, tag = 'internal scratch']
  %s0 = inlined_call_operand.vmem [shape: f32[5,256], index: 0, kind: input, shape index: {}]
  %s1 = inlined_call_operand.vmem [shape: bf16[64,5], index: 1, kind: input, shape index: {}]
  %s2 = inlined_call_operand.vmem [shape: f32[64,1], index: 2, kind: input, shape index: {}]
  %s3 = inlined_call_operand.vmem [shape: bf16[64,64], index: 3, kind: input, shape index: {}]
  %s4 = inlined_call_operand.vmem [shape: f32[64,1], index: 4, kind: input, shape index: {}]
  %s5 = inlined_call_operand.vmem [shape: bf16[64,64], index: 5, kind: input, shape index: {}]
  %s6 = inlined_call_operand.vmem [shape: f32[64,1], index: 6, kind: input, shape index: {}]
  %s7 = inlined_call_operand.vmem [shape: bf16[4,64], index: 7, kind: input, shape index: {}]
  %s8 = inlined_call_operand.vmem [shape: f32[4,1], index: 8, kind: input, shape index: {}]
  %s9 = inlined_call_operand.hbm [shape: f32[4,256], index: 9, kind: output, shape index: {}]
  %s10 = sld [smem:[#allocation0]]
  $region46: #{tpu_custom_call.1} parent=0
    _
  %s12 = ssub.s32 1, %s10
  %s13 = scalar_select 0, %s12, %s10
  $region1: #{tpu_custom_call.1} parent=0
    #allocation2 [shape = 'u8[4096]{0}', space=vmem, size = 0x1000, scoped, tag = 'output window, operand 0, single buffered']
    #allocation3 [shape = 's32[1]{0}', space=sflag, size = 0x4, scoped, tag = 'scoped memory for tpu_custom_call.1']
    %14 = vsyncpa [#allocation3], 0
    // Predicated region
    $region2: #{tpu_custom_call.1} parent=1 // pred_check
      _
    $region3: #{tpu_custom_call.1} parent=1 // pred_check_branch
      %16 = sbr.rel (0) target = $region5
    $region4: #{tpu_custom_call.1} parent=1 // pred_region
      _
    $region5: #{tpu_custom_call.1} parent=1 // pred_fallthru
      _
    // Predicated region
    $region6: #{tpu_custom_call.1} parent=1 // pred_check
      _
    $region7: #{tpu_custom_call.1} parent=1 // pred_check_branch
      %18 = sbr.rel (0) target = $region9
    $region8: #{tpu_custom_call.1} parent=1 // pred_region
      _
    $region9: #{tpu_custom_call.1} parent=1 // pred_fallthru
      _
    // Predicated region
    $region10: #{tpu_custom_call.1} parent=1 // pred_check
      _
    $region11: #{tpu_custom_call.1} parent=1 // pred_check_branch
      %20 = sbr.rel (0) target = $region13
    $region12: #{tpu_custom_call.1} parent=1 // pred_region
      _
    $region13: #{tpu_custom_call.1} parent=1 // pred_fallthru
      _
    // Predicated region
    $region14: #{tpu_custom_call.1} parent=1 // pred_check
      _
    $region15: #{tpu_custom_call.1} parent=1 // pred_check_branch
      %22 = sbr.rel (0) target = $region17
    $region16: #{tpu_custom_call.1} parent=1 // pred_region
      _
    $region17: #{tpu_custom_call.1} parent=1 // pred_fallthru
      _
    // Predicated region
    $region18: #{tpu_custom_call.1} parent=1 // pred_check
      _
    $region19: #{tpu_custom_call.1} parent=1 // pred_check_branch
      %24 = sbr.rel (0) target = $region21
    $region20: #{tpu_custom_call.1} parent=1 // pred_region
      _
    $region21: #{tpu_custom_call.1} parent=1 // pred_fallthru
      _
    // Predicated region
    $region22: #{tpu_custom_call.1} parent=1 // pred_check
      _
    $region23: #{tpu_custom_call.1} parent=1 // pred_check_branch
      %26 = sbr.rel (0) target = $region25
    $region24: #{tpu_custom_call.1} parent=1 // pred_region
      _
    $region25: #{tpu_custom_call.1} parent=1 // pred_fallthru
      _
    // Predicated region
    $region26: #{tpu_custom_call.1} parent=1 // pred_check
      _
    $region27: #{tpu_custom_call.1} parent=1 // pred_check_branch
      %28 = sbr.rel (0) target = $region29
    $region28: #{tpu_custom_call.1} parent=1 // pred_region
      _
    $region29: #{tpu_custom_call.1} parent=1 // pred_fallthru
      _
    // Predicated region
    $region30: #{tpu_custom_call.1} parent=1 // pred_check
      _
    $region31: #{tpu_custom_call.1} parent=1 // pred_check_branch
      %30 = sbr.rel (0) target = $region33
    $region32: #{tpu_custom_call.1} parent=1 // pred_region
      _
    $region33: #{tpu_custom_call.1} parent=1 // pred_fallthru
      _
    // Predicated region
    $region34: #{tpu_custom_call.1} parent=1 // pred_check
      _
    $region35: #{tpu_custom_call.1} parent=1 // pred_check_branch
      %32 = sbr.rel (0) target = $region37
    $region36: #{tpu_custom_call.1} parent=1 // pred_region
      _
    $region37: #{tpu_custom_call.1} parent=1 // pred_fallthru
      _
    %v34 = vld [vmem:[%s0] sm:$0x1f]
    %v35 = vld [vmem:[%s0 + $0x8] sm:$0x1f]
    %v36 = vpack.c.bf16 %v34, %v34
    %v37 = vpack.c.bf16 %v35, %v35
    %v38 = vld [vmem:[%s1] sm:$0xf]
    %v39 = vld [vmem:[%s1 + $0x4] sm:$0xf]
    %v40 = vld [vmem:[%s1 + $0x8] sm:$0xf]
    %v41 = vld [vmem:[%s1 + $0xc] sm:$0xf]
    %v42 = vld [vmem:[%s1 + $0x10] sm:$0xf]
    %v43 = vld [vmem:[%s1 + $0x14] sm:$0xf]
    %v44 = vld [vmem:[%s1 + $0x18] sm:$0xf]
    %v45 = vld [vmem:[%s1 + $0x1c] sm:$0xf]
    %v46 = vld [vmem:[%s2] sm:$0xff]
    %v47 = vld [vmem:[%s2 + $0x8] sm:$0xff]
    %v48 = vld [vmem:[%s2 + $0x10] sm:$0xff]
    %v49 = vld [vmem:[%s2 + $0x18] sm:$0xff]
    %v50 = vld [vmem:[%s2 + $0x20] sm:$0xff]
    %v51 = vld [vmem:[%s2 + $0x28] sm:$0xff]
    %v52 = vld [vmem:[%s2 + $0x30] sm:$0xff]
    %v53 = vld [vmem:[%s2 + $0x38] sm:$0xff]
    %55 = vset.pattern.permute.xlu0 0
    %56 = vperm.xlu0 %55, %v46
    %v57 = vpop.permute.xlu0 %56
    %60 = vset.pattern.permute.xlu0 0
    %61 = vperm.xlu0 %60, %v47
    %v62 = vpop.permute.xlu0 %61
    %65 = vset.pattern.permute.xlu0 0
    %66 = vperm.xlu0 %65, %v48
    %v67 = vpop.permute.xlu0 %66
    %70 = vset.pattern.permute.xlu0 0
    %71 = vperm.xlu0 %70, %v49
    %v72 = vpop.permute.xlu0 %71
    %75 = vset.pattern.permute.xlu0 0
    %76 = vperm.xlu0 %75, %v50
    %v77 = vpop.permute.xlu0 %76
    %80 = vset.pattern.permute.xlu0 0
    %81 = vperm.xlu0 %80, %v51
    %v82 = vpop.permute.xlu0 %81
    %85 = vset.pattern.permute.xlu0 0
    %86 = vperm.xlu0 %85, %v52
    %v87 = vpop.permute.xlu0 %86
    %90 = vset.pattern.permute.xlu0 0
    %91 = vperm.xlu0 %90, %v53
    %v92 = vpop.permute.xlu0 %91
    %v102 = vunpack.c.l.b16 %v38
    %v103 = vunpack.c.l.b16 %v39
    %v104 = vunpack.c.l.b16 %v40
    %v105 = vunpack.c.l.b16 %v41
    %v106 = vunpack.c.l.b16 %v42
    %v107 = vunpack.c.l.b16 %v43
    %v108 = vunpack.c.l.b16 %v44
    %v109 = vunpack.c.l.b16 %v45
    %v110 = vpack.c.b16 %v103, %v102
    %v111 = vpack.c.b16 %v105, %v104
    %v112 = vpack.c.b16 %v107, %v106
    %v113 = vpack.c.b16 %v109, %v108
    %vm114 = vcmask 39936
    %v116 = vsel %vm114, %v110, 0
    %v119 = vsel %vm114, %v111, 0
    %v122 = vsel %vm114, %v112, 0
    %v125 = vsel %vm114, %v113, 0
    %vm127 = vcmask 1041408
    %vm128 = vcmask 1042432
    %v129 = vsel %vm127, 4294967295, 65535
    %v130 = vsel %vm128, %v129, 0
    %v132 = vand.u32 %v36, %v130
    %v135 = vand.u32 %v37, %v130
    %137 = vmatprep.subr.bf16.mxu0 %v135
    %138 = vmatpush1.bf16.msra.mxu0 %v132
    %139 = vmatprep.subr.bf16.mxu0 0
    %140 = vmatpush1.bf16.msra.mxu0 0
    %141 = vmatprep.subr.bf16.mxu0 0
    %142 = vmatpush1.bf16.msra.mxu0 0
    %143 = vmatprep.subr.bf16.mxu0 0
    %144 = vmatpush1.bf16.msra.mxu0 0
    %145 = vmatprep.subr.bf16.mxu0 0
    %146 = vmatpush1.bf16.msra.mxu0 0
    %147 = vmatprep.subr.bf16.mxu0 0
    %148 = vmatpush1.bf16.msra.mxu0 0
    %149 = vmatprep.subr.bf16.mxu0 0
    %150 = vmatpush1.bf16.msra.mxu0 0
    %151 = vmatprep.subr.bf16.mxu0 0
    %152 = vmatpush1.bf16.msra.mxu0 0
    %153 = vmatprep.subr.bf16.mxu0 0
    %154 = vmatpush1.bf16.msra.mxu0 0
    %155 = vmatprep.subr.bf16.mxu0 0
    %156 = vmatpush1.bf16.msra.mxu0 0
    %157 = vmatprep.subr.bf16.mxu0 0
    %158 = vmatpush1.bf16.msra.mxu0 0
    %159 = vmatprep.subr.bf16.mxu0 0
    %160 = vmatpush1.bf16.msra.mxu0 0
    %161 = vmatprep.subr.bf16.mxu0 0
    %162 = vmatpush1.bf16.msra.mxu0 0
    %163 = vmatprep.subr.bf16.mxu0 0
    %164 = vmatpush1.bf16.msra.mxu0 0
    %165 = vmatprep.subr.bf16.mxu0 0
    %166 = vmatpush1.bf16.msra.mxu0 0
    %167 = vmatprep.subr.bf16.mxu0 0
    %168 = vmatpush1.bf16.msra.mxu0 0
    %169 = vmatprep.mubr.bf16.mxu0 0
    %170 = vmatmul.mubr.bf16.gmra.mrb[0].mxu0 %v116
    %v171 = vpop.f32.mrb[0].mxu0
    %v172 = vadd.f32 %v57, %v171
    %v173 = vpop.f32.mrb[0].mxu0
    %v174 = vadd.f32 %v57, %v173
    %v175 = vpop.f32.mrb[0].mxu0
    %v176 = vadd.f32 %v62, %v175
    %v177 = vpop.f32.mrb[0].mxu0
    %v178 = vadd.f32 %v62, %v177
    %179 = vmatprep.mubr.bf16.mxu0 0
    %180 = vmatmul.mubr.bf16.gmra.mrb[0].mxu0 %v119
    %v181 = vpop.f32.mrb[0].mxu0
    %v182 = vadd.f32 %v67, %v181
    %v183 = vpop.f32.mrb[0].mxu0
    %v184 = vadd.f32 %v67, %v183
    %v185 = vpop.f32.mrb[0].mxu0
    %v186 = vadd.f32 %v72, %v185
    %v187 = vpop.f32.mrb[0].mxu0
    %v188 = vadd.f32 %v72, %v187
    %189 = vmatprep.mubr.bf16.mxu0 0
    %190 = vmatmul.mubr.bf16.gmra.mrb[0].mxu0 %v122
    %v191 = vpop.f32.mrb[0].mxu0
    %v192 = vadd.f32 %v77, %v191
    %v193 = vpop.f32.mrb[0].mxu0
    %v194 = vadd.f32 %v77, %v193
    %v195 = vpop.f32.mrb[0].mxu0
    %v196 = vadd.f32 %v82, %v195
    %v197 = vpop.f32.mrb[0].mxu0
    %v198 = vadd.f32 %v82, %v197
    %199 = vmatprep.mubr.bf16.mxu0 0
    %200 = vmatmul.mubr.bf16.gmra.mrb[0].mxu0 %v125
    %v201 = vpop.f32.mrb[0].mxu0
    %v202 = vadd.f32 %v87, %v201
    %v203 = vpop.f32.mrb[0].mxu0
    %v204 = vadd.f32 %v87, %v203
    %v205 = vpop.f32.mrb[0].mxu0
    %v206 = vadd.f32 %v92, %v205
    %v207 = vpop.f32.mrb[0].mxu0
    %v208 = vadd.f32 %v92, %v207
    %209 = vdwg.mxu0
    %v210 = vmul.f32 %v172, 0.5
    %v211 = vmul.f32 %v174, 0.5
    %v212 = vmul.f32 %v176, 0.5
    %v213 = vmul.f32 %v178, 0.5
    %v214 = vmul.f32 %v182, 0.5
    %v215 = vmul.f32 %v184, 0.5
    %v216 = vmul.f32 %v186, 0.5
    %v217 = vmul.f32 %v188, 0.5
    %v218 = vmul.f32 %v192, 0.5
    %v219 = vmul.f32 %v194, 0.5
    %v220 = vmul.f32 %v196, 0.5
    %v221 = vmul.f32 %v198, 0.5
    %v222 = vmul.f32 %v202, 0.5
    %v223 = vmul.f32 %v204, 0.5
    %v224 = vmul.f32 %v206, 0.5
    %v225 = vmul.f32 %v208, 0.5
    %v226 = vtanh.pop %v210
    %v227 = vtanh.pop %v211
    %v228 = vtanh.pop %v212
    %v229 = vtanh.pop %v213
    %v230 = vtanh.pop %v214
    %v231 = vtanh.pop %v215
    %v232 = vtanh.pop %v216
    %v233 = vtanh.pop %v217
    %v234 = vtanh.pop %v218
    %v235 = vtanh.pop %v219
    %v236 = vtanh.pop %v220
    %v237 = vtanh.pop %v221
    %v238 = vtanh.pop %v222
    %v239 = vtanh.pop %v223
    %v240 = vtanh.pop %v224
    %v241 = vtanh.pop %v225
    %v242 = vadd.f32 %v226, 1.0
    %v243 = vadd.f32 %v227, 1.0
    %v244 = vadd.f32 %v228, 1.0
    %v245 = vadd.f32 %v229, 1.0
    %v246 = vadd.f32 %v230, 1.0
    %v247 = vadd.f32 %v231, 1.0
    %v248 = vadd.f32 %v232, 1.0
    %v249 = vadd.f32 %v233, 1.0
    %v250 = vadd.f32 %v234, 1.0
    %v251 = vadd.f32 %v235, 1.0
    %v252 = vadd.f32 %v236, 1.0
    %v253 = vadd.f32 %v237, 1.0
    %v254 = vadd.f32 %v238, 1.0
    %v255 = vadd.f32 %v239, 1.0
    %v256 = vadd.f32 %v240, 1.0
    %v257 = vadd.f32 %v241, 1.0
    %v258 = vmul.f32 %v210, %v242
    %v259 = vmul.f32 %v211, %v243
    %v260 = vmul.f32 %v212, %v244
    %v261 = vmul.f32 %v213, %v245
    %v262 = vmul.f32 %v214, %v246
    %v263 = vmul.f32 %v215, %v247
    %v264 = vmul.f32 %v216, %v248
    %v265 = vmul.f32 %v217, %v249
    %v266 = vmul.f32 %v218, %v250
    %v267 = vmul.f32 %v219, %v251
    %v268 = vmul.f32 %v220, %v252
    %v269 = vmul.f32 %v221, %v253
    %v270 = vmul.f32 %v222, %v254
    %v271 = vmul.f32 %v223, %v255
    %v272 = vmul.f32 %v224, %v256
    %v273 = vmul.f32 %v225, %v257
    %v274 = vld [vmem:[%s3] sm:$0xf]
    %v275 = vld [vmem:[%s3 + $0x4] sm:$0xf]
    %v276 = vld [vmem:[%s3 + $0x8] sm:$0xf]
    %v277 = vld [vmem:[%s3 + $0xc] sm:$0xf]
    %v278 = vld [vmem:[%s3 + $0x10] sm:$0xf]
    %v279 = vld [vmem:[%s3 + $0x14] sm:$0xf]
    %v280 = vld [vmem:[%s3 + $0x18] sm:$0xf]
    %v281 = vld [vmem:[%s3 + $0x1c] sm:$0xf]
    %v282 = vpack.c.bf16 %v260, %v258
    %v283 = vpack.c.bf16 %v261, %v259
    %v284 = vpack.c.bf16 %v264, %v262
    %v285 = vpack.c.bf16 %v265, %v263
    %v286 = vpack.c.bf16 %v268, %v266
    %v287 = vpack.c.bf16 %v269, %v267
    %v288 = vpack.c.bf16 %v272, %v270
    %v289 = vpack.c.bf16 %v273, %v271
    %v290 = vld [vmem:[%s4] sm:$0xff]
    %v291 = vld [vmem:[%s4 + $0x8] sm:$0xff]
    %v292 = vld [vmem:[%s4 + $0x10] sm:$0xff]
    %v293 = vld [vmem:[%s4 + $0x18] sm:$0xff]
    %v294 = vld [vmem:[%s4 + $0x20] sm:$0xff]
    %v295 = vld [vmem:[%s4 + $0x28] sm:$0xff]
    %v296 = vld [vmem:[%s4 + $0x30] sm:$0xff]
    %v297 = vld [vmem:[%s4 + $0x38] sm:$0xff]
    %299 = vset.pattern.permute.xlu0 0
    %300 = vperm.xlu0 %299, %v290
    %v301 = vpop.permute.xlu0 %300
    %304 = vset.pattern.permute.xlu0 0
    %305 = vperm.xlu0 %304, %v291
    %v306 = vpop.permute.xlu0 %305
    %309 = vset.pattern.permute.xlu0 0
    %310 = vperm.xlu0 %309, %v292
    %v311 = vpop.permute.xlu0 %310
    %314 = vset.pattern.permute.xlu0 0
    %315 = vperm.xlu0 %314, %v293
    %v316 = vpop.permute.xlu0 %315
    %319 = vset.pattern.permute.xlu0 0
    %320 = vperm.xlu0 %319, %v294
    %v321 = vpop.permute.xlu0 %320
    %324 = vset.pattern.permute.xlu0 0
    %325 = vperm.xlu0 %324, %v295
    %v326 = vpop.permute.xlu0 %325
    %329 = vset.pattern.permute.xlu0 0
    %330 = vperm.xlu0 %329, %v296
    %v331 = vpop.permute.xlu0 %330
    %334 = vset.pattern.permute.xlu0 0
    %335 = vperm.xlu0 %334, %v297
    %v336 = vpop.permute.xlu0 %335
    %v346 = vunpack.c.l.b16 %v274
    %v347 = vunpack.c.l.b16 %v275
    %v348 = vunpack.c.l.b16 %v276
    %v349 = vunpack.c.l.b16 %v277
    %v350 = vunpack.c.l.b16 %v278
    %v351 = vunpack.c.l.b16 %v279
    %v352 = vunpack.c.l.b16 %v280
    %v353 = vunpack.c.l.b16 %v281
    %v354 = vpack.c.b16 %v347, %v346
    %v355 = vpack.c.b16 %v349, %v348
    %v356 = vpack.c.b16 %v351, %v350
    %v357 = vpack.c.b16 %v353, %v352
    %vm358 = vcmask 523264
    %v360 = vsel %vm358, %v354, 0
    %v363 = vsel %vm358, %v355, 0
    %v366 = vsel %vm358, %v356, 0
    %v369 = vsel %vm358, %v357, 0
    %371 = vmatprep.subr.bf16.mxu0 %v283
    %372 = vmatpush1.bf16.msra.mxu0 %v282
    %373 = vmatprep.subr.bf16.mxu0 %v285
    %374 = vmatpush1.bf16.msra.mxu0 %v284
    %375 = vmatprep.subr.bf16.mxu0 %v287
    %376 = vmatpush1.bf16.msra.mxu0 %v286
    %377 = vmatprep.subr.bf16.mxu0 %v289
    %378 = vmatpush1.bf16.msra.mxu0 %v288
    %379 = vmatprep.subr.bf16.mxu0 0
    %380 = vmatpush1.bf16.msra.mxu0 0
    %381 = vmatprep.subr.bf16.mxu0 0
    %382 = vmatpush1.bf16.msra.mxu0 0
    %383 = vmatprep.subr.bf16.mxu0 0
    %384 = vmatpush1.bf16.msra.mxu0 0
    %385 = vmatprep.subr.bf16.mxu0 0
    %386 = vmatpush1.bf16.msra.mxu0 0
    %387 = vmatprep.subr.bf16.mxu0 0
    %388 = vmatpush1.bf16.msra.mxu0 0
    %389 = vmatprep.subr.bf16.mxu0 0
    %390 = vmatpush1.bf16.msra.mxu0 0
    %391 = vmatprep.subr.bf16.mxu0 0
    %392 = vmatpush1.bf16.msra.mxu0 0
    %393 = vmatprep.subr.bf16.mxu0 0
    %394 = vmatpush1.bf16.msra.mxu0 0
    %395 = vmatprep.subr.bf16.mxu0 0
    %396 = vmatpush1.bf16.msra.mxu0 0
    %397 = vmatprep.subr.bf16.mxu0 0
    %398 = vmatpush1.bf16.msra.mxu0 0
    %399 = vmatprep.subr.bf16.mxu0 0
    %400 = vmatpush1.bf16.msra.mxu0 0
    %401 = vmatprep.subr.bf16.mxu0 0
    %402 = vmatpush1.bf16.msra.mxu0 0
    %403 = vmatprep.mubr.bf16.mxu0 0
    %404 = vmatmul.mubr.bf16.gmra.mrb[0].mxu0 %v360
    %v405 = vpop.f32.mrb[0].mxu0
    %v406 = vadd.f32 %v301, %v405
    %v407 = vpop.f32.mrb[0].mxu0
    %v408 = vadd.f32 %v301, %v407
    %v409 = vpop.f32.mrb[0].mxu0
    %v410 = vadd.f32 %v306, %v409
    %v411 = vpop.f32.mrb[0].mxu0
    %v412 = vadd.f32 %v306, %v411
    %413 = vmatprep.mubr.bf16.mxu0 0
    %414 = vmatmul.mubr.bf16.gmra.mrb[0].mxu0 %v363
    %v415 = vpop.f32.mrb[0].mxu0
    %v416 = vadd.f32 %v311, %v415
    %v417 = vpop.f32.mrb[0].mxu0
    %v418 = vadd.f32 %v311, %v417
    %v419 = vpop.f32.mrb[0].mxu0
    %v420 = vadd.f32 %v316, %v419
    %v421 = vpop.f32.mrb[0].mxu0
    %v422 = vadd.f32 %v316, %v421
    %423 = vmatprep.mubr.bf16.mxu0 0
    %424 = vmatmul.mubr.bf16.gmra.mrb[0].mxu0 %v366
    %v425 = vpop.f32.mrb[0].mxu0
    %v426 = vadd.f32 %v321, %v425
    %v427 = vpop.f32.mrb[0].mxu0
    %v428 = vadd.f32 %v321, %v427
    %v429 = vpop.f32.mrb[0].mxu0
    %v430 = vadd.f32 %v326, %v429
    %v431 = vpop.f32.mrb[0].mxu0
    %v432 = vadd.f32 %v326, %v431
    %433 = vmatprep.mubr.bf16.mxu0 0
    %434 = vmatmul.mubr.bf16.gmra.mrb[0].mxu0 %v369
    %v435 = vpop.f32.mrb[0].mxu0
    %v436 = vadd.f32 %v331, %v435
    %v437 = vpop.f32.mrb[0].mxu0
    %v438 = vadd.f32 %v331, %v437
    %v439 = vpop.f32.mrb[0].mxu0
    %v440 = vadd.f32 %v336, %v439
    %v441 = vpop.f32.mrb[0].mxu0
    %v442 = vadd.f32 %v336, %v441
    %443 = vdwg.mxu0
    %v444 = vmul.f32 %v406, 0.5
    %v445 = vmul.f32 %v408, 0.5
    %v446 = vmul.f32 %v410, 0.5
    %v447 = vmul.f32 %v412, 0.5
    %v448 = vmul.f32 %v416, 0.5
    %v449 = vmul.f32 %v418, 0.5
    %v450 = vmul.f32 %v420, 0.5
    %v451 = vmul.f32 %v422, 0.5
    %v452 = vmul.f32 %v426, 0.5
    %v453 = vmul.f32 %v428, 0.5
    %v454 = vmul.f32 %v430, 0.5
    %v455 = vmul.f32 %v432, 0.5
    %v456 = vmul.f32 %v436, 0.5
    %v457 = vmul.f32 %v438, 0.5
    %v458 = vmul.f32 %v440, 0.5
    %v459 = vmul.f32 %v442, 0.5
    %v460 = vtanh.pop %v444
    %v461 = vtanh.pop %v445
    %v462 = vtanh.pop %v446
    %v463 = vtanh.pop %v447
    %v464 = vtanh.pop %v448
    %v465 = vtanh.pop %v449
    %v466 = vtanh.pop %v450
    %v467 = vtanh.pop %v451
    %v468 = vtanh.pop %v452
    %v469 = vtanh.pop %v453
    %v470 = vtanh.pop %v454
    %v471 = vtanh.pop %v455
    %v472 = vtanh.pop %v456
    %v473 = vtanh.pop %v457
    %v474 = vtanh.pop %v458
    %v475 = vtanh.pop %v459
    %v476 = vadd.f32 %v460, 1.0
    %v477 = vadd.f32 %v461, 1.0
    %v478 = vadd.f32 %v462, 1.0
    %v479 = vadd.f32 %v463, 1.0
    %v480 = vadd.f32 %v464, 1.0
    %v481 = vadd.f32 %v465, 1.0
    %v482 = vadd.f32 %v466, 1.0
    %v483 = vadd.f32 %v467, 1.0
    %v484 = vadd.f32 %v468, 1.0
    %v485 = vadd.f32 %v469, 1.0
    %v486 = vadd.f32 %v470, 1.0
    %v487 = vadd.f32 %v471, 1.0
    %v488 = vadd.f32 %v472, 1.0
    %v489 = vadd.f32 %v473, 1.0
    %v490 = vadd.f32 %v474, 1.0
    %v491 = vadd.f32 %v475, 1.0
    %v492 = vmul.f32 %v444, %v476
    %v493 = vmul.f32 %v445, %v477
    %v494 = vmul.f32 %v446, %v478
    %v495 = vmul.f32 %v447, %v479
    %v496 = vmul.f32 %v448, %v480
    %v497 = vmul.f32 %v449, %v481
    %v498 = vmul.f32 %v450, %v482
    %v499 = vmul.f32 %v451, %v483
    %v500 = vmul.f32 %v452, %v484
    %v501 = vmul.f32 %v453, %v485
    %v502 = vmul.f32 %v454, %v486
    %v503 = vmul.f32 %v455, %v487
    %v504 = vmul.f32 %v456, %v488
    %v505 = vmul.f32 %v457, %v489
    %v506 = vmul.f32 %v458, %v490
    %v507 = vmul.f32 %v459, %v491
    %v508 = vld [vmem:[%s5] sm:$0xf]
    %v509 = vld [vmem:[%s5 + $0x4] sm:$0xf]
    %v510 = vld [vmem:[%s5 + $0x8] sm:$0xf]
    %v511 = vld [vmem:[%s5 + $0xc] sm:$0xf]
    %v512 = vld [vmem:[%s5 + $0x10] sm:$0xf]
    %v513 = vld [vmem:[%s5 + $0x14] sm:$0xf]
    %v514 = vld [vmem:[%s5 + $0x18] sm:$0xf]
    %v515 = vld [vmem:[%s5 + $0x1c] sm:$0xf]
    %v516 = vpack.c.bf16 %v494, %v492
    %v517 = vpack.c.bf16 %v495, %v493
    %v518 = vpack.c.bf16 %v498, %v496
    %v519 = vpack.c.bf16 %v499, %v497
    %v520 = vpack.c.bf16 %v502, %v500
    %v521 = vpack.c.bf16 %v503, %v501
    %v522 = vpack.c.bf16 %v506, %v504
    %v523 = vpack.c.bf16 %v507, %v505
    %v524 = vld [vmem:[%s6] sm:$0xff]
    %v525 = vld [vmem:[%s6 + $0x8] sm:$0xff]
    %v526 = vld [vmem:[%s6 + $0x10] sm:$0xff]
    %v527 = vld [vmem:[%s6 + $0x18] sm:$0xff]
    %v528 = vld [vmem:[%s6 + $0x20] sm:$0xff]
    %v529 = vld [vmem:[%s6 + $0x28] sm:$0xff]
    %v530 = vld [vmem:[%s6 + $0x30] sm:$0xff]
    %v531 = vld [vmem:[%s6 + $0x38] sm:$0xff]
    %533 = vset.pattern.permute.xlu0 0
    %534 = vperm.xlu0 %533, %v524
    %v535 = vpop.permute.xlu0 %534
    %538 = vset.pattern.permute.xlu0 0
    %539 = vperm.xlu0 %538, %v525
    %v540 = vpop.permute.xlu0 %539
    %543 = vset.pattern.permute.xlu0 0
    %544 = vperm.xlu0 %543, %v526
    %v545 = vpop.permute.xlu0 %544
    %548 = vset.pattern.permute.xlu0 0
    %549 = vperm.xlu0 %548, %v527
    %v550 = vpop.permute.xlu0 %549
    %553 = vset.pattern.permute.xlu0 0
    %554 = vperm.xlu0 %553, %v528
    %v555 = vpop.permute.xlu0 %554
    %558 = vset.pattern.permute.xlu0 0
    %559 = vperm.xlu0 %558, %v529
    %v560 = vpop.permute.xlu0 %559
    %563 = vset.pattern.permute.xlu0 0
    %564 = vperm.xlu0 %563, %v530
    %v565 = vpop.permute.xlu0 %564
    %568 = vset.pattern.permute.xlu0 0
    %569 = vperm.xlu0 %568, %v531
    %v570 = vpop.permute.xlu0 %569
    %v580 = vunpack.c.l.b16 %v508
    %v581 = vunpack.c.l.b16 %v509
    %v582 = vunpack.c.l.b16 %v510
    %v583 = vunpack.c.l.b16 %v511
    %v584 = vunpack.c.l.b16 %v512
    %v585 = vunpack.c.l.b16 %v513
    %v586 = vunpack.c.l.b16 %v514
    %v587 = vunpack.c.l.b16 %v515
    %v588 = vpack.c.b16 %v581, %v580
    %v589 = vpack.c.b16 %v583, %v582
    %v590 = vpack.c.b16 %v585, %v584
    %v591 = vpack.c.b16 %v587, %v586
    %v593 = vsel %vm358, %v588, 0
    %v596 = vsel %vm358, %v589, 0
    %v599 = vsel %vm358, %v590, 0
    %v602 = vsel %vm358, %v591, 0
    %604 = vmatprep.subr.bf16.mxu0 %v517
    %605 = vmatpush1.bf16.msra.mxu0 %v516
    %606 = vmatprep.subr.bf16.mxu0 %v519
    %607 = vmatpush1.bf16.msra.mxu0 %v518
    %608 = vmatprep.subr.bf16.mxu0 %v521
    %609 = vmatpush1.bf16.msra.mxu0 %v520
    %610 = vmatprep.subr.bf16.mxu0 %v523
    %611 = vmatpush1.bf16.msra.mxu0 %v522
    %612 = vmatprep.subr.bf16.mxu0 0
    %613 = vmatpush1.bf16.msra.mxu0 0
    %614 = vmatprep.subr.bf16.mxu0 0
    %615 = vmatpush1.bf16.msra.mxu0 0
    %616 = vmatprep.subr.bf16.mxu0 0
    %617 = vmatpush1.bf16.msra.mxu0 0
    %618 = vmatprep.subr.bf16.mxu0 0
    %619 = vmatpush1.bf16.msra.mxu0 0
    %620 = vmatprep.subr.bf16.mxu0 0
    %621 = vmatpush1.bf16.msra.mxu0 0
    %622 = vmatprep.subr.bf16.mxu0 0
    %623 = vmatpush1.bf16.msra.mxu0 0
    %624 = vmatprep.subr.bf16.mxu0 0
    %625 = vmatpush1.bf16.msra.mxu0 0
    %626 = vmatprep.subr.bf16.mxu0 0
    %627 = vmatpush1.bf16.msra.mxu0 0
    %628 = vmatprep.subr.bf16.mxu0 0
    %629 = vmatpush1.bf16.msra.mxu0 0
    %630 = vmatprep.subr.bf16.mxu0 0
    %631 = vmatpush1.bf16.msra.mxu0 0
    %632 = vmatprep.subr.bf16.mxu0 0
    %633 = vmatpush1.bf16.msra.mxu0 0
    %634 = vmatprep.subr.bf16.mxu0 0
    %635 = vmatpush1.bf16.msra.mxu0 0
    %636 = vmatprep.mubr.bf16.mxu0 0
    %637 = vmatmul.mubr.bf16.gmra.mrb[0].mxu0 %v593
    %v638 = vpop.f32.mrb[0].mxu0
    %v639 = vadd.f32 %v535, %v638
    %v640 = vpop.f32.mrb[0].mxu0
    %v641 = vadd.f32 %v535, %v640
    %v642 = vpop.f32.mrb[0].mxu0
    %v643 = vadd.f32 %v540, %v642
    %v644 = vpop.f32.mrb[0].mxu0
    %v645 = vadd.f32 %v540, %v644
    %646 = vmatprep.mubr.bf16.mxu0 0
    %647 = vmatmul.mubr.bf16.gmra.mrb[0].mxu0 %v596
    %v648 = vpop.f32.mrb[0].mxu0
    %v649 = vadd.f32 %v545, %v648
    %v650 = vpop.f32.mrb[0].mxu0
    %v651 = vadd.f32 %v545, %v650
    %v652 = vpop.f32.mrb[0].mxu0
    %v653 = vadd.f32 %v550, %v652
    %v654 = vpop.f32.mrb[0].mxu0
    %v655 = vadd.f32 %v550, %v654
    %656 = vmatprep.mubr.bf16.mxu0 0
    %657 = vmatmul.mubr.bf16.gmra.mrb[0].mxu0 %v599
    %v658 = vpop.f32.mrb[0].mxu0
    %v659 = vadd.f32 %v555, %v658
    %v660 = vpop.f32.mrb[0].mxu0
    %v661 = vadd.f32 %v555, %v660
    %v662 = vpop.f32.mrb[0].mxu0
    %v663 = vadd.f32 %v560, %v662
    %v664 = vpop.f32.mrb[0].mxu0
    %v665 = vadd.f32 %v560, %v664
    %666 = vmatprep.mubr.bf16.mxu0 0
    %667 = vmatmul.mubr.bf16.gmra.mrb[0].mxu0 %v602
    %v668 = vpop.f32.mrb[0].mxu0
    %v669 = vadd.f32 %v565, %v668
    %v670 = vpop.f32.mrb[0].mxu0
    %v671 = vadd.f32 %v565, %v670
    %v672 = vpop.f32.mrb[0].mxu0
    %v673 = vadd.f32 %v570, %v672
    %v674 = vpop.f32.mrb[0].mxu0
    %v675 = vadd.f32 %v570, %v674
    %676 = vdwg.mxu0
    %v677 = vmul.f32 %v639, 0.5
    %v678 = vmul.f32 %v641, 0.5
    %v679 = vmul.f32 %v643, 0.5
    %v680 = vmul.f32 %v645, 0.5
    %v681 = vmul.f32 %v649, 0.5
    %v682 = vmul.f32 %v651, 0.5
    %v683 = vmul.f32 %v653, 0.5
    %v684 = vmul.f32 %v655, 0.5
    %v685 = vmul.f32 %v659, 0.5
    %v686 = vmul.f32 %v661, 0.5
    %v687 = vmul.f32 %v663, 0.5
    %v688 = vmul.f32 %v665, 0.5
    %v689 = vmul.f32 %v669, 0.5
    %v690 = vmul.f32 %v671, 0.5
    %v691 = vmul.f32 %v673, 0.5
    %v692 = vmul.f32 %v675, 0.5
    %v693 = vtanh.pop %v677
    %v694 = vtanh.pop %v678
    %v695 = vtanh.pop %v679
    %v696 = vtanh.pop %v680
    %v697 = vtanh.pop %v681
    %v698 = vtanh.pop %v682
    %v699 = vtanh.pop %v683
    %v700 = vtanh.pop %v684
    %v701 = vtanh.pop %v685
    %v702 = vtanh.pop %v686
    %v703 = vtanh.pop %v687
    %v704 = vtanh.pop %v688
    %v705 = vtanh.pop %v689
    %v706 = vtanh.pop %v690
    %v707 = vtanh.pop %v691
    %v708 = vtanh.pop %v692
    %v709 = vadd.f32 %v693, 1.0
    %v710 = vadd.f32 %v694, 1.0
    %v711 = vadd.f32 %v695, 1.0
    %v712 = vadd.f32 %v696, 1.0
    %v713 = vadd.f32 %v697, 1.0
    %v714 = vadd.f32 %v698, 1.0
    %v715 = vadd.f32 %v699, 1.0
    %v716 = vadd.f32 %v700, 1.0
    %v717 = vadd.f32 %v701, 1.0
    %v718 = vadd.f32 %v702, 1.0
    %v719 = vadd.f32 %v703, 1.0
    %v720 = vadd.f32 %v704, 1.0
    %v721 = vadd.f32 %v705, 1.0
    %v722 = vadd.f32 %v706, 1.0
    %v723 = vadd.f32 %v707, 1.0
    %v724 = vadd.f32 %v708, 1.0
    %v725 = vmul.f32 %v677, %v709
    %v726 = vmul.f32 %v678, %v710
    %v727 = vmul.f32 %v679, %v711
    %v728 = vmul.f32 %v680, %v712
    %v729 = vmul.f32 %v681, %v713
    %v730 = vmul.f32 %v682, %v714
    %v731 = vmul.f32 %v683, %v715
    %v732 = vmul.f32 %v684, %v716
    %v733 = vmul.f32 %v685, %v717
    %v734 = vmul.f32 %v686, %v718
    %v735 = vmul.f32 %v687, %v719
    %v736 = vmul.f32 %v688, %v720
    %v737 = vmul.f32 %v689, %v721
    %v738 = vmul.f32 %v690, %v722
    %v739 = vmul.f32 %v691, %v723
    %v740 = vmul.f32 %v692, %v724
    %v741 = vld [vmem:[%s7] sm:$0x3]
    %v742 = vpack.c.bf16 %v727, %v725
    %v743 = vpack.c.bf16 %v728, %v726
    %v744 = vpack.c.bf16 %v731, %v729
    %v745 = vpack.c.bf16 %v732, %v730
    %v746 = vpack.c.bf16 %v735, %v733
    %v747 = vpack.c.bf16 %v736, %v734
    %v748 = vpack.c.bf16 %v739, %v737
    %v749 = vpack.c.bf16 %v740, %v738
    %v750 = vld [vmem:[%s8] sm:$0xf]
    %752 = vset.pattern.permute.xlu0 0
    %753 = vperm.xlu0 %752, %v750
    %v754 = vpop.permute.xlu0 %753
    %v757 = vsel %vm358, %v741, 0
    %759 = vmatprep.subr.bf16.mxu0 %v743
    %760 = vmatpush1.bf16.msra.mxu0 %v742
    %761 = vmatprep.subr.bf16.mxu0 %v745
    %762 = vmatpush1.bf16.msra.mxu0 %v744
    %763 = vmatprep.subr.bf16.mxu0 %v747
    %764 = vmatpush1.bf16.msra.mxu0 %v746
    %765 = vmatprep.subr.bf16.mxu0 %v749
    %766 = vmatpush1.bf16.msra.mxu0 %v748
    %767 = vmatprep.subr.bf16.mxu0 0
    %768 = vmatpush1.bf16.msra.mxu0 0
    %769 = vmatprep.subr.bf16.mxu0 0
    %770 = vmatpush1.bf16.msra.mxu0 0
    %771 = vmatprep.subr.bf16.mxu0 0
    %772 = vmatpush1.bf16.msra.mxu0 0
    %773 = vmatprep.subr.bf16.mxu0 0
    %774 = vmatpush1.bf16.msra.mxu0 0
    %775 = vmatprep.subr.bf16.mxu0 0
    %776 = vmatpush1.bf16.msra.mxu0 0
    %777 = vmatprep.subr.bf16.mxu0 0
    %778 = vmatpush1.bf16.msra.mxu0 0
    %779 = vmatprep.subr.bf16.mxu0 0
    %780 = vmatpush1.bf16.msra.mxu0 0
    %781 = vmatprep.subr.bf16.mxu0 0
    %782 = vmatpush1.bf16.msra.mxu0 0
    %783 = vmatprep.subr.bf16.mxu0 0
    %784 = vmatpush1.bf16.msra.mxu0 0
    %785 = vmatprep.subr.bf16.mxu0 0
    %786 = vmatpush1.bf16.msra.mxu0 0
    %787 = vmatprep.subr.bf16.mxu0 0
    %788 = vmatpush1.bf16.msra.mxu0 0
    %789 = vmatprep.subr.bf16.mxu0 0
    %790 = vmatpush1.bf16.msra.mxu0 0
    %791 = vmatprep.mubr.bf16.mxu0 0
    %792 = vmatmul.mubr.bf16.gmra.mrb[0].mxu0 %v757
    %v793 = vpop.f32.mrb[0].mxu0
    %v794 = vadd.f32 %v754, %v793
    %v795 = vpop.f32.mrb[0].mxu0
    %v796 = vadd.f32 %v754, %v795
    %v797 = vpop.f32.mrb[0].mxu0
    %v798 = vpop.f32.mrb[0].mxu0
    %799 = vdwg.mxu0
    %v800 = vlaneseq
    %v801 = vshrl.u32 %v800, 7
    %vm802 = vcmp.lt.s32.totalorder %v801, 3
    %v805 = vrot.slane %v34, 1
    %v806 = vrot.slane %v35, 1
    %v809 = vsel %vm802, %v805, 0.0
    %v810 = vsel %vm802, %v806, 0.0
    %v811 = vmul.f32 %v809, %v794
    %v812 = vmul.f32 %v810, %v796
    %v815 = vrot.slane %v811, 1
    %v816 = vrot.slane %v812, 1
    %v819 = vadd.f32 %v811, %v815
    %v820 = vadd.f32 %v812, %v816
    %v821 = vrot.slane %v811, 2
    %v822 = vrot.slane %v812, 2
    %v825 = vadd.f32 %v819, %v821
    %v826 = vadd.f32 %v820, %v822
    %v827 = vmul.f32 %v809, %v809
    %v828 = vmul.f32 %v810, %v810
    %v831 = vrot.slane %v827, 1
    %v832 = vrot.slane %v828, 1
    %v835 = vadd.f32 %v827, %v831
    %v836 = vadd.f32 %v828, %v832
    %v837 = vrot.slane %v827, 2
    %v838 = vrot.slane %v828, 2
    %v841 = vadd.f32 %v835, %v837
    %v842 = vadd.f32 %v836, %v838
    %v843 = vadd.f32 %v841, 1e-12
    %v844 = vadd.f32 %v842, 1e-12
    %v845 = vrcp.pop %v843
    %v846 = vrcp.pop %v844
    %v847 = vmul.f32 %v825, %v845
    %v848 = vmul.f32 %v826, %v846
    %v849 = vlaneseq
    %v850 = vshrl.u32 %v849, 7
    %v851 = vsub.s32 0, %v850
    %v852 = vrot.slane %v847, %v851
    %v853 = vlaneseq
    %v854 = vshrl.u32 %v853, 7
    %v855 = vsub.s32 0, %v854
    %v856 = vrot.slane %v848, %v855
    %v857 = vmul.f32 %v852, %v809
    %v858 = vmul.f32 %v856, %v810
    %v859 = vsub.f32 %v794, %v857
    %v860 = vsub.f32 %v796, %v858
    %v861 = vadd.f32 %v794, 3.1415927
    %v862 = vadd.f32 %v796, 3.1415927
    %v863 = vand.u32 2147483647, %v861
    %v864 = vrcp.pop 6.2831855
    %v865 = vmul.f32 %v863, %v864
    %v866 = vfloor.f32 %v865
    %v867 = vmul.f32 %v866, 6.2831855
    %v868 = vsub.f32 %v863, %v867
    %vm869 = vcmp.eq.f32.partialorder %v868, 6.2831855
    %v870 = vsel %vm869, 0.0, %v868
    %v871 = vand.u32 2147483647, %v870
    %v872 = vand.u32 %v861, 2147483648
    %v873 = vor.u32 %v871, %v872
    %v874 = vand.u32 2147483647, %v862
    %v875 = vrcp.pop 6.2831855
    %v876 = vmul.f32 %v874, %v875
    %v877 = vfloor.f32 %v876
    %v878 = vmul.f32 %v877, 6.2831855
    %v879 = vsub.f32 %v874, %v878
    %vm880 = vcmp.eq.f32.partialorder %v879, 6.2831855
    %v881 = vsel %vm880, 0.0, %v879
    %v882 = vand.u32 2147483647, %v881
    %v883 = vand.u32 %v862, 2147483648
    %v884 = vor.u32 %v882, %v883
    %v885 = vsub.f32 %v873, 3.1415927
    %v886 = vsub.f32 %v884, 3.1415927
    %v887 = vsel %vm802, %v859, %v885
    %v888 = vsel %vm802, %v860, %v886
    %v891 = vcombine.low %v887, %v888
    %893 = vst [vmem:[#allocation2] sm:$0xff] %v891
    // Predicated region
    $region38: #{tpu_custom_call.1} parent=1 // pred_check
      _
    $region39: #{tpu_custom_call.1} parent=1 // pred_check_branch
      %895 = sbr.rel (0) target = $region41
    $region40: #{tpu_custom_call.1} parent=1 // pred_region
      %s897 = ssub.s32 128, 128
      %898 = vsyncadd [#allocation3], %s897
      %s900 = sshll.u32 [#allocation2], 4
      %s901 = int_to_ptr.vmem [resolvable:$true] %s900
      %903 = dma.vmem_to_hbm [thread:$0]  %s901, 128, %s9, [#allocation3]
    $region41: #{tpu_custom_call.1} parent=1 // pred_fallthru
      _
    // Predicated region
    $region42: #{tpu_custom_call.1} parent=1 // pred_check
      _
    $region43: #{tpu_custom_call.1} parent=1 // pred_check_branch
      %905 = sbr.rel (0) target = $region45
    $region44: #{tpu_custom_call.1} parent=1 // pred_region
      %906 = dma.done [#allocation3], 128
    $region45: #{tpu_custom_call.1} parent=1 // pred_fallthru
      _
    %907 = vsyncpa [#allocation3], 1

</llo_original>
